<compile_context>
chip_gen: v7x
topology: tpu7x:2x2x1
jax: 0.10.0
libtpu: 0.0.40
codegen_flags: <defaults>
</compile_context>

<pallas_src>
import math

import jax
import jax.numpy as jnp
from jax.experimental import pallas as pl
from jax.experimental.pallas import tpu as pltpu


def _pair(v):
    return (v, v) if isinstance(v, int) else tuple(v)


def _same_pad_amounts(kernel_size, stride, size2, size3):
    """Exactly mirrors SamePad2d.forward's arithmetic (incl. width/height naming)."""
    k = _pair(kernel_size)
    s = _pair(stride)
    in_width = size2   # dim 2 of NCHW
    in_height = size3  # dim 3 of NCHW
    out_width = math.ceil(float(in_width) / float(s[0]))
    out_height = math.ceil(float(in_height) / float(s[1]))
    pad_along_width = (out_width - 1) * s[0] + k[0] - in_width
    pad_along_height = (out_height - 1) * s[1] + k[1] - in_height
    pad_left = int(math.floor(pad_along_width / 2))
    pad_top = int(math.floor(pad_along_height / 2))
    pad_right = int(pad_along_width - pad_left)
    pad_bottom = int(pad_along_height - pad_top)
    # F.pad(x, (pad_left, pad_right, pad_top, pad_bottom)):
    #   dim 3 (last)           gets (pad_left, pad_right)
    #   dim 2 (second-to-last) gets (pad_top, pad_bottom)
    return (pad_top, pad_bottom), (pad_left, pad_right)


def _split_crop_pad(p):
    """F.pad semantics: a negative pad crops. Return (crop, pad), both >= 0."""
    return (-p, 0) if p < 0 else (0, p)


def _vmem_capacity_bytes():
    """Per-core VMEM capacity; conservative (v7x-sized) fallback."""
    try:
        cap = int(getattr(pltpu.get_tpu_info(), "vmem_capacity_bytes"))
        if cap > 0:
            return cap
    except Exception:
        pass
    return 64 << 20


def _num_tensorcores():
    """Best-effort TensorCore count per chip (v7x has 2, v5e/v6e have 1)."""
    try:
        kind = jax.devices()[0].device_kind.lower()
        if "v7" in kind:
            return 2
    except Exception:
        pass
    return 1


def _sublane_tile(dtype):
    itemsize = jnp.dtype(dtype).itemsize
    return 8 * max(1, 4 // itemsize)   # f32 -> 8, bf16 -> 16, int8 -> 32


def _tiled_image_bytes(h, w, dtype):
    """VMEM bytes for one (h, w) image in its real (sublane, 128)-tiled layout."""
    sub = _sublane_tile(dtype)
    itemsize = jnp.dtype(dtype).itemsize
    hs = -(-h // sub) * sub
    ws = -(-w // 128) * 128
    return hs * ws * itemsize


def _choose_images_per_block(m, per_image_bytes, target_bytes, num_cores):
    """Largest divisor of m whose (in+out, tiled) block bytes fit the target.

    On multi-TensorCore chips, prefer a divisor giving a grid-step count that
    is a multiple of the core count so the "parallel" grid axis load-balances.
    Returns None if even a single image exceeds the target.
    """
    cap = target_bytes // max(1, per_image_bytes)
    if cap < 1:
        return None
    divisors = [d for d in range(1, m + 1) if m % d == 0 and d <= cap]
    best = max(divisors)
    if num_cores > 1:
        balanced = [d for d in divisors if (m // d) % num_cores == 0]
        if balanced:
            best = max(balanced)
    return best


def same_pad_2d(x, kernel_size, stride):
    """x: (N, C, H, W) -> TF-'SAME' zero-padded tensor, matching SamePad2d."""
    N, C, H0, W0 = x.shape
    (pt, pb), (pleft, pright) = _same_pad_amounts(kernel_size, stride, H0, W0)

    # Negative pads (kernel < stride) crop, exactly like F.pad.
    crop_t, pt = _split_crop_pad(pt)
    crop_b, pb = _split_crop_pad(pb)
    crop_l, pleft = _split_crop_pad(pleft)
    crop_r, pright = _split_crop_pad(pright)
    if crop_t or crop_b or crop_l or crop_r:
        x = x[:, :, crop_t:H0 - crop_b, crop_l:W0 - crop_r]

    # Early exit: identity or pure crop -> no kernel launch, no HBM round trip.
    if pt == 0 and pb == 0 and pleft == 0 and pright == 0:
        return x

    N, C, H, W = x.shape
    Hp = H + pt + pb
    Wp = W + pleft + pright
    M = N * C
    dt = x.dtype
    itemsize = jnp.dtype(dt).itemsize

    if M == 0 or H == 0 or W == 0:
        return jnp.pad(x, ((0, 0), (0, 0), (pt, pb), (pleft, pright)))

    # --- Per-generation VMEM budget (tiled layout + double buffering) ---
    vmem_cap = _vmem_capacity_bytes()
    vmem_limit = min((vmem_cap * 3) // 4, 100 << 20)
    num_cores = _num_tensorcores()
    # (in + out) tiled bytes per image; the BlockSpec pipeline double-buffers
    # each operand, so keep the single-buffer block at <= limit / 4.
    per_image = _tiled_image_bytes(H, W, dt) + _tiled_image_bytes(Hp, Wp, dt)
    target = min(vmem_limit // 4, 16 << 20)

    blk = _choose_images_per_block(M, per_image, target, num_cores)
    if blk is None:
        # A single image exceeds the comfortable budget; try the raw capacity.
        if 2 * per_image <= (vmem_cap * 9) // 10:
            blk = 1
            vmem_limit = (vmem_cap * 9) // 10
        else:
            # TODO(synk): H-banded Pallas tiling for single images exceeding VMEM.
            return jnp.pad(x, ((0, 0), (0, 0), (pt, pb), (pleft, pright)))

    x_flat = x.reshape(M, H, W)

    # NOTE: the (blk, H, W)/(blk, Hp, Wp) blocks are legal because their last
    # two dims equal the full array dims (no (8,128) divisibility needed).
    def pad_kernel(x_ref, o_ref):
        # x_ref: (blk, H, W); o_ref: (blk, Hp, Wp).
        # Every output element is written exactly once, and every store spans
        # the full (lane-dense) output width Wp.
        xv = x_ref[...]
        parts = []
        if pleft > 0:
            parts.append(jnp.zeros((blk, H, pleft), dt))
        parts.append(xv)
        if pright > 0:
            parts.append(jnp.zeros((blk, H, pright), dt))
        band = parts[0] if len(parts) == 1 else jnp.concatenate(parts, axis=-1)
        o_ref[:, pl.ds(pt, H), :] = band
        if pt > 0:
            o_ref[:, pl.ds(0, pt), :] = jnp.zeros((blk, pt, Wp), dt)
        if pb > 0:
            o_ref[:, pl.ds(pt + H, pb), :] = jnp.zeros((blk, pb, Wp), dt)

    out_flat = pl.pallas_call(
        pad_kernel,
        out_shape=jax.ShapeDtypeStruct((M, Hp, Wp), dt),
        grid=(M // blk,),
        in_specs=[pl.BlockSpec((blk, H, W), lambda i: (i, 0, 0))],
        out_specs=pl.BlockSpec((blk, Hp, Wp), lambda i: (i, 0, 0)),
        compiler_params=pltpu.CompilerParams(
            dimension_semantics=("parallel",),
            vmem_limit_bytes=int(vmem_limit),
        ),
        cost_estimate=pl.CostEstimate(
            flops=0,
            transcendentals=0,
            bytes_accessed=(M * H * W + M * Hp * Wp) * itemsize,
        ),
    )(x_flat)
    return out_flat.reshape(N, C, Hp, Wp)


if __name__ == "__main__":
    key = jax.random.PRNGKey(0)

    def reference(x, kernel_size, stride):
        N, C, H0, W0 = x.shape
        (pt, pb), (pleft, pright) = _same_pad_amounts(kernel_size, stride, H0, W0)
        ct, pt = _split_crop_pad(pt)
        cb, pb = _split_crop_pad(pb)
        cl, pleft = _split_crop_pad(pleft)
        cr, pright = _split_crop_pad(pright)
        xc = x[:, :, ct:H0 - cb, cl:W0 - cr]
        return jnp.pad(xc, ((0, 0), (0, 0), (pt, pb), (pleft, pright)))

    cases = [
        # (N, C, H, W, kernel_size, stride, dtype)
        (2, 4, 16, 16, 3, 2, jnp.float32),   # pads only on bottom/right
        (2, 4, 15, 15, 3, 1, jnp.float32),   # pads on all four sides
        (2, 4, 16, 16, 1, 2, jnp.float32),   # negative pads -> F.pad-style crop
        (2, 4, 16, 16, 3, 1, jnp.bfloat16),  # bf16 exercises sublane accounting
        (2, 4, 16, 16, 3, 3, jnp.float32),   # k == s -> no pad, early exit
    ]
    for (N, C, H, W, k, s, dtype) in cases:
        key, sub = jax.random.split(key)
        x = jax.random.normal(sub, (N, C, H, W), dtype=dtype)
        y = jax.block_until_ready(same_pad_2d(x, k, s))
        y_ref = reference(x, k, s)
        assert y.shape == y_ref.shape, (y.shape, y_ref.shape)
        assert jnp.array_equal(y, y_ref), f"mismatch for case {(N, C, H, W, k, s, dtype)}"

    print("KERNEL_OK")
</pallas_src>

<mosaic_0001>
module attributes {stable_mosaic.version = 11 : i64} {
  func.func @pad_kernel(%arg0: i32, %arg1: memref<8x16x16xf32, #tpu.memory_space<vmem>>, %arg2: memref<8x17x17xf32, #tpu.memory_space<vmem>>) attributes {dimension_semantics = [#tpu.dimension_semantics<parallel>], iteration_bounds = array<i64: 1>, scalar_prefetch = 0 : i64, scratch_operands = 0 : i64, tpu.core_type = #tpu.core_type<tc>, window_params = [{transform_indices = @transform_0, window_bounds = array<i64: 8, 16, 16>}, {transform_indices = @transform_1, window_bounds = array<i64: 8, 17, 17>}]} {
    %c0 = arith.constant 0 : index
    %c0_0 = arith.constant 0 : index
    %c0_1 = arith.constant 0 : index
    %0 = vector.load %arg1[%c0, %c0_0, %c0_1] : memref<8x16x16xf32, #tpu.memory_space<vmem>>, vector<8x16x16xf32>
    %cst = arith.constant 0.000000e+00 : f32
    %1 = vector.broadcast %cst : f32 to vector<8x16x1xf32>
    %2 = tpu.concatenate %0, %1 in 2 : vector<8x16x16xf32>, vector<8x16x1xf32> -> vector<8x16x17xf32>
    %c0_2 = arith.constant 0 : index
    %c0_3 = arith.constant 0 : index
    %c0_4 = arith.constant 0 : index
    %3 = vector.load %arg2[%c0_2, %c0_3, %c0_4] : memref<8x17x17xf32, #tpu.memory_space<vmem>>, vector<8x16x17xf32>
    tpu.vector_store %arg2[%c0_2, %c0_3, %c0_4], %2 {strides = array<i32>} : memref<8x17x17xf32, #tpu.memory_space<vmem>>, vector<8x16x17xf32>,
    %cst_5 = arith.constant 0.000000e+00 : f32
    %4 = vector.broadcast %cst_5 : f32 to vector<8x1x17xf32>
    %c0_6 = arith.constant 0 : index
    %c16 = arith.constant 16 : index
    %c0_7 = arith.constant 0 : index
    %5 = vector.load %arg2[%c0_6, %c16, %c0_7] : memref<8x17x17xf32, #tpu.memory_space<vmem>>, vector<8x1x17xf32>
    tpu.vector_store %arg2[%c0_6, %c16, %c0_7], %4 {strides = array<i32>} : memref<8x17x17xf32, #tpu.memory_space<vmem>>, vector<8x1x17xf32>,
    return
  }
  func.func @transform_0(%arg0: i32) -> (i32, i32, i32) {
    %c0_i32 = arith.constant 0 : i32
    %c0_i32_0 = arith.constant 0 : i32
    %c0_i32_1 = arith.constant 0 : i32
    return %arg0, %c0_i32, %c0_i32_0 : i32, i32, i32
  }
  func.func @transform_1(%arg0: i32) -> (i32, i32, i32) {
    %c0_i32 = arith.constant 0 : i32
    %c0_i32_0 = arith.constant 0 : i32
    %c0_i32_1 = arith.constant 0 : i32
    return %arg0, %c0_i32, %c0_i32_0 : i32, i32, i32
  }
}

</mosaic_0001>

<llo_original>
// kernel: tpu_custom_call.1
$region0: #{tpu_custom_call.1}
  #allocation0 [shape = 'u32[]', space=smem, size = 0x4, offset = 0x4, fixed_abs, tag = 'smem constant byte address 0x4 - core index']
  #allocation1 [shape = 'u32[144,128]{1,0:T(1,128)}', space=vmem, size = 0x12000, scoped, tag = 'internal scratch']
  %s0 = inlined_call_operand.hbm [shape: f32[8,16,16], index: 0, kind: input, shape index: {}]
  %s1 = inlined_call_operand.vmem [shape: f32[8,17,17], index: 1, kind: output, shape index: {}]
  %s2 = sld [smem:[#allocation0]]
  $region18: #{tpu_custom_call.1} parent=0
    _
  %s4 = ssub.s32 1, %s2
  %s5 = scalar_select 0, %s4, %s2
  $region1: #{tpu_custom_call.1} parent=0
    #allocation2 [shape = 'u8[65536]{0}', space=vmem, size = 0x10000, scoped, tag = 'input window, operand 0, single buffered']
    #allocation3 [shape = 's32[1]{0}', space=sflag, size = 0x4, scoped, tag = 'scoped memory for tpu_custom_call.1']
    %6 = vsyncpa [#allocation3], 0
    // Predicated region
    $region2: #{tpu_custom_call.1} parent=1 // pred_check
      _
    $region3: #{tpu_custom_call.1} parent=1 // pred_check_branch
      %8 = sbr.rel (0) target = $region5
    $region4: #{tpu_custom_call.1} parent=1 // pred_region
      %s10 = ssub.s32 2048, 2048
      %11 = vsyncadd [#allocation3], %s10
      %s12 = sshll.u32 [#allocation2], 4
      %s13 = int_to_ptr.vmem [resolvable:$true] %s12
      %18 = dma.hbm_to_vmem [thread:$0]  %s0, 2048, %s13, [#allocation3], 128, 128, 8
    $region5: #{tpu_custom_call.1} parent=1 // pred_fallthru
      _
    // Predicated region
    $region6: #{tpu_custom_call.1} parent=1 // pred_check
      _
    $region7: #{tpu_custom_call.1} parent=1 // pred_check_branch
      %20 = sbr.rel (0) target = $region9
    $region8: #{tpu_custom_call.1} parent=1 // pred_region
      %21 = dma.done [#allocation3], 2048
    $region9: #{tpu_custom_call.1} parent=1 // pred_fallthru
      _
    %v22 = vld [vmem:[#allocation2] sm:$0xff]
    %v23 = vld [vmem:[#allocation2 + $0x8] sm:$0xff]
    %v24 = vld [vmem:[#allocation2 + $0x10] sm:$0xff]
    %v25 = vld [vmem:[#allocation2 + $0x18] sm:$0xff]
    %v26 = vld [vmem:[#allocation2 + $0x20] sm:$0xff]
    %v27 = vld [vmem:[#allocation2 + $0x28] sm:$0xff]
    %v28 = vld [vmem:[#allocation2 + $0x30] sm:$0xff]
    %v29 = vld [vmem:[#allocation2 + $0x38] sm:$0xff]
    %v30 = vld [vmem:[#allocation2 + $0x40] sm:$0xff]
    %v31 = vld [vmem:[#allocation2 + $0x48] sm:$0xff]
    %v32 = vld [vmem:[#allocation2 + $0x50] sm:$0xff]
    %v33 = vld [vmem:[#allocation2 + $0x58] sm:$0xff]
    %v34 = vld [vmem:[#allocation2 + $0x60] sm:$0xff]
    %v35 = vld [vmem:[#allocation2 + $0x68] sm:$0xff]
    %v36 = vld [vmem:[#allocation2 + $0x70] sm:$0xff]
    %v37 = vld [vmem:[#allocation2 + $0x78] sm:$0xff]
    %vm38 = vcmask 130048
    %v39 = vsel %vm38, %v22, 0.0
    %v40 = vsel %vm38, %v23, 0.0
    %v41 = vsel %vm38, %v24, 0.0
    %v42 = vsel %vm38, %v25, 0.0
    %v43 = vsel %vm38, %v26, 0.0
    %v44 = vsel %vm38, %v27, 0.0
    %v45 = vsel %vm38, %v28, 0.0
    %v46 = vsel %vm38, %v29, 0.0
    %v47 = vsel %vm38, %v30, 0.0
    %v48 = vsel %vm38, %v31, 0.0
    %v49 = vsel %vm38, %v32, 0.0
    %v50 = vsel %vm38, %v33, 0.0
    %v51 = vsel %vm38, %v34, 0.0
    %v52 = vsel %vm38, %v35, 0.0
    %v53 = vsel %vm38, %v36, 0.0
    %v54 = vsel %vm38, %v37, 0.0
    %vm55 = vcmask 138240
    %56 = vst.msk [vmem:[%s1] sm:$0xff] %vm55, %v39
    %57 = vst.msk [vmem:[%s1 + $0x8] sm:$0xff] %vm55, %v40
    %58 = vst.msk [vmem:[%s1 + $0x18] sm:$0xff] %vm55, %v41
    %59 = vst.msk [vmem:[%s1 + $0x20] sm:$0xff] %vm55, %v42
    %60 = vst.msk [vmem:[%s1 + $0x30] sm:$0xff] %vm55, %v43
    %61 = vst.msk [vmem:[%s1 + $0x38] sm:$0xff] %vm55, %v44
    %62 = vst.msk [vmem:[%s1 + $0x48] sm:$0xff] %vm55, %v45
    %63 = vst.msk [vmem:[%s1 + $0x50] sm:$0xff] %vm55, %v46
    %64 = vst.msk [vmem:[%s1 + $0x60] sm:$0xff] %vm55, %v47
    %65 = vst.msk [vmem:[%s1 + $0x68] sm:$0xff] %vm55, %v48
    %66 = vst.msk [vmem:[%s1 + $0x78] sm:$0xff] %vm55, %v49
    %67 = vst.msk [vmem:[%s1 + $0x80] sm:$0xff] %vm55, %v50
    %68 = vst.msk [vmem:[%s1 + $0x90] sm:$0xff] %vm55, %v51
    %69 = vst.msk [vmem:[%s1 + $0x98] sm:$0xff] %vm55, %v52
    %70 = vst.msk [vmem:[%s1 + $0xa8] sm:$0xff] %vm55, %v53
    %71 = vst.msk [vmem:[%s1 + $0xb0] sm:$0xff] %vm55, %v54
    %vm72 = vcmask 131072
    %73 = vst.msk [vmem:[%s1 + $0x10] sm:$0x1] %vm72, 0.0
    %74 = vst.msk [vmem:[%s1 + $0x28] sm:$0x1] %vm72, 0.0
    %75 = vst.msk [vmem:[%s1 + $0x40] sm:$0x1] %vm72, 0.0
    %76 = vst.msk [vmem:[%s1 + $0x58] sm:$0x1] %vm72, 0.0
    %77 = vst.msk [vmem:[%s1 + $0x70] sm:$0x1] %vm72, 0.0
    %78 = vst.msk [vmem:[%s1 + $0x88] sm:$0x1] %vm72, 0.0
    %79 = vst.msk [vmem:[%s1 + $0xa0] sm:$0x1] %vm72, 0.0
    %80 = vst.msk [vmem:[%s1 + $0xb8] sm:$0x1] %vm72, 0.0
    // Predicated region
    $region10: #{tpu_custom_call.1} parent=1 // pred_check
      _
    $region11: #{tpu_custom_call.1} parent=1 // pred_check_branch
      %82 = sbr.rel (0) target = $region13
    $region12: #{tpu_custom_call.1} parent=1 // pred_region
      _
    $region13: #{tpu_custom_call.1} parent=1 // pred_fallthru
      _
    // Predicated region
    $region14: #{tpu_custom_call.1} parent=1 // pred_check
      _
    $region15: #{tpu_custom_call.1} parent=1 // pred_check_branch
      %84 = sbr.rel (0) target = $region17
    $region16: #{tpu_custom_call.1} parent=1 // pred_region
      _
    $region17: #{tpu_custom_call.1} parent=1 // pred_fallthru
      _
    %85 = vsyncpa [#allocation3], 1

</llo_original>
